<compile_context>
chip_gen: v6e
topology: v6e:2x2x1
jax: 0.10.0
libtpu: 0.0.40
codegen_flags: <defaults>
</compile_context>

<pallas_src>
import jax
import jax.numpy as jnp
from jax.experimental import pallas as pl
from jax.experimental.pallas import tpu as pltpu

TARGET_DIM = 10      # opt.target (10 label columns in the script)
NOISE_DIM = 100
H1, H2 = 128, 256
NEG_SLOPE = 0.01     # PyTorch F.leaky_relu default


def _leaky_relu(x):
    return jnp.where(x > 0, x, NEG_SLOPE * x)


def _round_up(x, m):
    return (x + m - 1) // m * m


def _hw_budget():
    """(max_tile_rows, vmem_limit_bytes) chosen per TPU generation."""
    try:
        vmem = pltpu.get_tpu_info().vmem_capacity_bytes
    except Exception:
        vmem = 64 * 1024 * 1024                       # conservative default
    if vmem >= 100 * 1024 * 1024:                     # v5e / v6e: 128 MiB VMEM
        return 4096, 96 * 1024 * 1024
    return 2048, 56 * 1024 * 1024                     # v7x: 64 MiB VMEM per TC


def _choose_tile(batch, max_tile):
    """Pick a batch tile (multiple of 8) aiming for >= 2 grid steps (megacore)."""
    pb0 = _round_up(max(batch, 8), 8)
    if pb0 > 8:
        half = -(-pb0 // 2)
        tb = min(max_tile, _round_up(half, 8))
    else:
        tb = 8
    pb = _round_up(batch, tb)
    return tb, pb


def discriminator_kernel(vec_ref, tgt_ref,
                         w1a_ref, w1b_ref, b1_ref,
                         wa_ref, ba_ref,
                         wr_ref, br_ref,
                         w4_ref, b4_ref,
                         out_ref):
    # bf16 operands, f32 accumulation for every MXU dot.
    vec = vec_ref[...].astype(jnp.bfloat16)
    tgt = tgt_ref[...].astype(jnp.bfloat16)

    # Linear(110 -> 128): concat folded into two matmuls (no HBM round-trip).
    h = (jnp.dot(vec, w1a_ref[...], preferred_element_type=jnp.float32)
         + jnp.dot(tgt, w1b_ref[...], preferred_element_type=jnp.float32)
         + b1_ref[...])

    # Attention: a = softmax(leaky_relu(Wa h + ba), axis=-1); h = h * a.
    a = (jnp.dot(h.astype(jnp.bfloat16), wa_ref[...],
                 preferred_element_type=jnp.float32) + ba_ref[...])
    a = _leaky_relu(a)
    a = a - jnp.max(a, axis=1, keepdims=True)
    e = jnp.exp(a)
    inv = pl.reciprocal(jnp.sum(e, axis=1, keepdims=True), approx=True)
    h = h * (e * inv)

    # ResidualBlock(128 -> 256): both branch matmuls fused into one (128, 512) dot.
    yz = (jnp.dot(h.astype(jnp.bfloat16), wr_ref[...],
                  preferred_element_type=jnp.float32) + br_ref[...])
    y = _leaky_relu(yz[:, :H2])
    z = yz[:, H2:]
    r = _leaky_relu(z + y)

    # Linear(256 -> 1) on VPU multiply + XLU lane reduce (f32): no zero-padded MXU
    # dot and a lane-thin (tb, 1) output block (4 B/row HBM writeback).
    o = jnp.sum(r * w4_ref[...], axis=-1, keepdims=True) + b4_ref[...]

    # sigmoid via exp (EUP) + approx reciprocal (EUP) instead of a VPU divide.
    out_ref[...] = pl.reciprocal(1.0 + jnp.exp(-o), approx=True)


def init_params(key):
    """Deterministic PyTorch-Linear-style init (uniform +/- 1/sqrt(fan_in))."""
    def linear(key, fan_in, fan_out):
        kw, kb = jax.random.split(key)
        bound = 1.0 / jnp.sqrt(fan_in)
        w = jax.random.uniform(kw, (fan_in, fan_out), jnp.float32, -bound, bound)
        b = jax.random.uniform(kb, (1, fan_out), jnp.float32, -bound, bound)
        return w, b

    keys = jax.random.split(key, 5)
    in_dim = NOISE_DIM + TARGET_DIM
    w1, b1 = linear(keys[0], in_dim, H1)     # model[0]: Linear(110, 128)
    wa, ba = linear(keys[1], H1, H1)         # Attention.layer: Linear(128, 128)
    wr1, br1 = linear(keys[2], H1, H2)       # ResidualBlock.layer1
    wr2, br2 = linear(keys[3], H1, H2)       # ResidualBlock.layer2
    w4, b4 = linear(keys[4], H2, 1)          # model[3]: Linear(256, 1)
    return (w1, b1, wa, ba, wr1, br1, wr2, br2, w4, b4)


def pack_params(params):
    """Convert PyTorch-layout params to the kernel layout (split/fused/bf16)."""
    (w1, b1, wa, ba, wr1, br1, wr2, br2, w4, b4) = params
    w1a = w1[:NOISE_DIM].astype(jnp.bfloat16)            # (100, 128) bf16
    w1b = w1[NOISE_DIM:].astype(jnp.bfloat16)            # (10, 128)  bf16
    wa_b = wa.astype(jnp.bfloat16)                        # (128, 128) bf16
    wr = jnp.concatenate([wr1, wr2], axis=1).astype(jnp.bfloat16)   # (128, 512)
    br = jnp.concatenate([br1, br2], axis=1)              # (1, 512) f32
    w4r = w4.T                                            # (1, 256) f32 (VPU path)
    b4r = b4.reshape(1, 1)                                # (1, 1)   f32
    return (w1a, w1b, b1, wa_b, ba, wr, br, w4r, b4r)


def discriminator_forward(vec, target, params):
    packed = pack_params(params)
    B = vec.shape[0]

    max_tile, vmem_limit = _hw_budget()
    tb, pb = _choose_tile(B, max_tile)
    if pb != B:
        vec = jnp.pad(vec, ((0, pb - B), (0, 0)))
        target = jnp.pad(target, ((0, pb - B), (0, 0)))

    grid = (pb // tb,)

    in_specs = [pl.BlockSpec((tb, NOISE_DIM), lambda i: (i, 0)),
                pl.BlockSpec((tb, TARGET_DIM), lambda i: (i, 0))]
    # Weights: constant block index => resident in VMEM across the whole grid.
    in_specs += [pl.BlockSpec(p.shape, lambda i: (0, 0)) for p in packed]

    flops = 2 * pb * (NOISE_DIM * H1 + TARGET_DIM * H1
                      + H1 * H1 + H1 * 2 * H2 + H2)
    bytes_accessed = (pb * ((NOISE_DIM + TARGET_DIM) * 4 + 4)
                      + sum(int(p.size) * p.dtype.itemsize for p in packed))
    cost = pl.CostEstimate(flops=flops,
                           transcendentals=pb * (H1 + 2),
                           bytes_accessed=bytes_accessed)

    fn = pl.pallas_call(
        discriminator_kernel,
        out_shape=jax.ShapeDtypeStruct((pb, 1), jnp.float32),
        grid=grid,
        in_specs=in_specs,
        out_specs=pl.BlockSpec((tb, 1), lambda i: (i, 0)),
        compiler_params=pltpu.CompilerParams(
            dimension_semantics=("parallel",),
            vmem_limit_bytes=vmem_limit),
        cost_estimate=cost,
    )
    out = fn(vec, target, *packed)
    return out[:B]


def reference_forward(vec, target, params):
    """Pure-JAX f32 reference mirroring the PyTorch module."""
    (w1, b1, wa, ba, wr1, br1, wr2, br2, w4, b4) = params
    x = jnp.concatenate([vec, target], axis=-1)
    h = x @ w1 + b1
    a = _leaky_relu(h @ wa + ba)
    a = jax.nn.softmax(a, axis=1)
    h = h * a
    y = _leaky_relu(h @ wr1 + br1)
    z = h @ wr2 + br2
    r = _leaky_relu(z + y)
    return jax.nn.sigmoid(r @ w4 + b4)


if __name__ == "__main__":
    key = jax.random.PRNGKey(0)
    k_params, k_vec, k_tgt = jax.random.split(key, 3)
    params = init_params(k_params)

    # Small, deterministic test (exact batch tile).
    B = 8
    vec = jax.random.normal(k_vec, (B, NOISE_DIM), jnp.float32)
    target = jax.random.normal(k_tgt, (B, TARGET_DIM), jnp.float32)
    out = jax.block_until_ready(discriminator_forward(vec, target, params))
    ref = reference_forward(vec, target, params)
    assert out.shape == (B, 1)
    # Tolerance covers bf16 matmul operands (f32 accumulation) + approx recips.
    assert jnp.allclose(out, ref, atol=1e-2, rtol=1e-2), (out, ref)

    # Ragged batch (exercises pad-and-slice remainder path and a 2-step grid).
    B2 = 13
    vec2 = jax.random.normal(jax.random.PRNGKey(1), (B2, NOISE_DIM), jnp.float32)
    tgt2 = jax.random.normal(jax.random.PRNGKey(2), (B2, TARGET_DIM), jnp.float32)
    out2 = jax.block_until_ready(discriminator_forward(vec2, tgt2, params))
    ref2 = reference_forward(vec2, tgt2, params)
    assert out2.shape == (B2, 1)
    assert jnp.allclose(out2, ref2, atol=1e-2, rtol=1e-2), (out2, ref2)

    print("KERNEL_OK")
</pallas_src>

<mosaic_0001>
module attributes {stable_mosaic.version = 11 : i64} {
  func.func @discriminator_kernel(%arg0: i32, %arg1: memref<8x100xf32, #tpu.memory_space<vmem>>, %arg2: memref<8x10xf32, #tpu.memory_space<vmem>>, %arg3: memref<100x128xbf16, #tpu.memory_space<vmem>>, %arg4: memref<10x128xbf16, #tpu.memory_space<vmem>>, %arg5: memref<1x128xf32, #tpu.memory_space<vmem>>, %arg6: memref<128x128xbf16, #tpu.memory_space<vmem>>, %arg7: memref<1x128xf32, #tpu.memory_space<vmem>>, %arg8: memref<128x512xbf16, #tpu.memory_space<vmem>>, %arg9: memref<1x512xf32, #tpu.memory_space<vmem>>, %arg10: memref<1x256xf32, #tpu.memory_space<vmem>>, %arg11: memref<1x1xf32, #tpu.memory_space<vmem>>, %arg12: memref<8x1xf32, #tpu.memory_space<vmem>>) attributes {dimension_semantics = [#tpu.dimension_semantics<parallel>], iteration_bounds = array<i64: 1>, scalar_prefetch = 0 : i64, scratch_operands = 0 : i64, tpu.core_type = #tpu.core_type<tc>, window_params = [{transform_indices = @transform_0, window_bounds = array<i64: 8, 100>}, {transform_indices = @transform_1, window_bounds = array<i64: 8, 10>}, {pipeline_mode = #tpu.pipeline_mode<synchronous>, transform_indices = @transform_2, window_bounds = array<i64: 100, 128>}, {pipeline_mode = #tpu.pipeline_mode<synchronous>, transform_indices = @transform_3, window_bounds = array<i64: 10, 128>}, {pipeline_mode = #tpu.pipeline_mode<synchronous>, transform_indices = @transform_4, window_bounds = array<i64: 1, 128>}, {pipeline_mode = #tpu.pipeline_mode<synchronous>, transform_indices = @transform_5, window_bounds = array<i64: 128, 128>}, {pipeline_mode = #tpu.pipeline_mode<synchronous>, transform_indices = @transform_6, window_bounds = array<i64: 1, 128>}, {pipeline_mode = #tpu.pipeline_mode<synchronous>, transform_indices = @transform_7, window_bounds = array<i64: 128, 512>}, {pipeline_mode = #tpu.pipeline_mode<synchronous>, transform_indices = @transform_8, window_bounds = array<i64: 1, 512>}, {pipeline_mode = #tpu.pipeline_mode<synchronous>, transform_indices = @transform_9, window_bounds = array<i64: 1, 256>}, {pipeline_mode = #tpu.pipeline_mode<synchronous>, transform_indices = @transform_10, window_bounds = array<i64: 1, 1>}, {transform_indices = @transform_11, window_bounds = array<i64: 8, 1>}]} {
    %c0 = arith.constant 0 : index
    %c0_0 = arith.constant 0 : index
    %0 = vector.load %arg1[%c0, %c0_0] : memref<8x100xf32, #tpu.memory_space<vmem>>, vector<8x100xf32>
    %1 = arith.truncf %0 : vector<8x100xf32> to vector<8x100xbf16>
    %c0_1 = arith.constant 0 : index
    %c0_2 = arith.constant 0 : index
    %2 = vector.load %arg2[%c0_1, %c0_2] : memref<8x10xf32, #tpu.memory_space<vmem>>, vector<8x10xf32>
    %3 = arith.truncf %2 : vector<8x10xf32> to vector<8x10xbf16>
    %c0_3 = arith.constant 0 : index
    %c0_4 = arith.constant 0 : index
    %4 = vector.load %arg3[%c0_3, %c0_4] : memref<100x128xbf16, #tpu.memory_space<vmem>>, vector<100x128xbf16>
    %cst = arith.constant dense<0.000000e+00> : vector<8x128xf32>
    %5 = tpu.matmul %1, %4, %cst {dimension_numbers = #tpu.dot_dimension_numbers<[1], [0], [0], [1], [0, 0, 1, 1], [], []>} : vector<8x100xbf16>, vector<100x128xbf16>, vector<8x128xf32> -> vector<8x128xf32>
    %c0_5 = arith.constant 0 : index
    %c0_6 = arith.constant 0 : index
    %6 = vector.load %arg4[%c0_5, %c0_6] : memref<10x128xbf16, #tpu.memory_space<vmem>>, vector<10x128xbf16>
    %cst_7 = arith.constant dense<0.000000e+00> : vector<8x128xf32>
    %7 = tpu.matmul %3, %6, %cst_7 {dimension_numbers = #tpu.dot_dimension_numbers<[1], [0], [0], [1], [0, 0, 1, 1], [], []>} : vector<8x10xbf16>, vector<10x128xbf16>, vector<8x128xf32> -> vector<8x128xf32>
    %8 = arith.addf %5, %7 : vector<8x128xf32>
    %c0_8 = arith.constant 0 : index
    %c0_9 = arith.constant 0 : index
    %9 = vector.load %arg5[%c0_8, %c0_9] : memref<1x128xf32, #tpu.memory_space<vmem>>, vector<1x128xf32>
    %10 = vector.broadcast %9 : vector<1x128xf32> to vector<8x128xf32>
    %11 = arith.addf %8, %10 : vector<8x128xf32>
    %12 = arith.truncf %11 : vector<8x128xf32> to vector<8x128xbf16>
    %c0_10 = arith.constant 0 : index
    %c0_11 = arith.constant 0 : index
    %13 = vector.load %arg6[%c0_10, %c0_11] : memref<128x128xbf16, #tpu.memory_space<vmem>>, vector<128x128xbf16>
    %cst_12 = arith.constant dense<0.000000e+00> : vector<8x128xf32>
    %14 = tpu.matmul %12, %13, %cst_12 {dimension_numbers = #tpu.dot_dimension_numbers<[1], [0], [0], [1], [0, 0, 1, 1], [], []>} : vector<8x128xbf16>, vector<128x128xbf16>, vector<8x128xf32> -> vector<8x128xf32>
    %c0_13 = arith.constant 0 : index
    %c0_14 = arith.constant 0 : index
    %15 = vector.load %arg7[%c0_13, %c0_14] : memref<1x128xf32, #tpu.memory_space<vmem>>, vector<1x128xf32>
    %16 = vector.broadcast %15 : vector<1x128xf32> to vector<8x128xf32>
    %17 = arith.addf %14, %16 : vector<8x128xf32>
    %cst_15 = arith.constant 0.000000e+00 : f32
    %18 = vector.broadcast %cst_15 : f32 to vector<8x128xf32>
    %19 = arith.cmpf ogt, %17, %18 : vector<8x128xf32>
    %cst_16 = arith.constant 0.00999999977 : f32
    %20 = vector.broadcast %cst_16 : f32 to vector<8x128xf32>
    %21 = arith.mulf %20, %17 : vector<8x128xf32>
    %22 = arith.select %19, %17, %21 : vector<8x128xi1>, vector<8x128xf32>
    %cst_17 = arith.constant dense<0xFF800000> : vector<8xf32>
    %23 = vector.multi_reduction <maximumf>, %22, %cst_17 [1] : vector<8x128xf32> to vector<8xf32>
    %24 = vector.shape_cast %23 : vector<8xf32> to vector<8x1xf32>
    %25 = vector.broadcast %24 : vector<8x1xf32> to vector<8x128xf32>
    %26 = arith.subf %22, %25 : vector<8x128xf32>
    %27 = math.exp %26 : vector<8x128xf32>
    %cst_18 = arith.constant dense<0.000000e+00> : vector<8xf32>
    %28 = vector.multi_reduction <add>, %27, %cst_18 [1] : vector<8x128xf32> to vector<8xf32>
    %29 = vector.shape_cast %28 : vector<8xf32> to vector<8x1xf32>
    %30 = tpu.reciprocal %29 {approx = true} : vector<8x1xf32> -> vector<8x1xf32>
    %31 = vector.broadcast %30 : vector<8x1xf32> to vector<8x128xf32>
    %32 = arith.mulf %27, %31 : vector<8x128xf32>
    %33 = arith.mulf %11, %32 : vector<8x128xf32>
    %34 = arith.truncf %33 : vector<8x128xf32> to vector<8x128xbf16>
    %c0_19 = arith.constant 0 : index
    %c0_20 = arith.constant 0 : index
    %35 = vector.load %arg8[%c0_19, %c0_20] : memref<128x512xbf16, #tpu.memory_space<vmem>>, vector<128x512xbf16>
    %cst_21 = arith.constant dense<0.000000e+00> : vector<8x512xf32>
    %36 = tpu.matmul %34, %35, %cst_21 {dimension_numbers = #tpu.dot_dimension_numbers<[1], [0], [0], [1], [0, 0, 1, 1], [], []>} : vector<8x128xbf16>, vector<128x512xbf16>, vector<8x512xf32> -> vector<8x512xf32>
    %c0_22 = arith.constant 0 : index
    %c0_23 = arith.constant 0 : index
    %37 = vector.load %arg9[%c0_22, %c0_23] : memref<1x512xf32, #tpu.memory_space<vmem>>, vector<1x512xf32>
    %38 = vector.broadcast %37 : vector<1x512xf32> to vector<8x512xf32>
    %39 = arith.addf %36, %38 : vector<8x512xf32>
    %40 = vector.extract_strided_slice %39 {offsets = [0, 0], sizes = [8, 256], strides = [1, 1]} : vector<8x512xf32> to vector<8x256xf32>
    %cst_24 = arith.constant 0.000000e+00 : f32
    %41 = vector.broadcast %cst_24 : f32 to vector<8x256xf32>
    %42 = arith.cmpf ogt, %40, %41 : vector<8x256xf32>
    %cst_25 = arith.constant 0.00999999977 : f32
    %43 = vector.broadcast %cst_25 : f32 to vector<8x256xf32>
    %44 = arith.mulf %43, %40 : vector<8x256xf32>
    %45 = arith.select %42, %40, %44 : vector<8x256xi1>, vector<8x256xf32>
    %46 = vector.extract_strided_slice %39 {offsets = [0, 256], sizes = [8, 256], strides = [1, 1]} : vector<8x512xf32> to vector<8x256xf32>
    %47 = arith.addf %46, %45 : vector<8x256xf32>
    %cst_26 = arith.constant 0.000000e+00 : f32
    %48 = vector.broadcast %cst_26 : f32 to vector<8x256xf32>
    %49 = arith.cmpf ogt, %47, %48 : vector<8x256xf32>
    %cst_27 = arith.constant 0.00999999977 : f32
    %50 = vector.broadcast %cst_27 : f32 to vector<8x256xf32>
    %51 = arith.mulf %50, %47 : vector<8x256xf32>
    %52 = arith.select %49, %47, %51 : vector<8x256xi1>, vector<8x256xf32>
    %c0_28 = arith.constant 0 : index
    %c0_29 = arith.constant 0 : index
    %53 = vector.load %arg10[%c0_28, %c0_29] : memref<1x256xf32, #tpu.memory_space<vmem>>, vector<1x256xf32>
    %54 = vector.broadcast %53 : vector<1x256xf32> to vector<8x256xf32>
    %55 = arith.mulf %52, %54 : vector<8x256xf32>
    %cst_30 = arith.constant dense<0.000000e+00> : vector<8xf32>
    %56 = vector.multi_reduction <add>, %55, %cst_30 [1] : vector<8x256xf32> to vector<8xf32>
    %57 = vector.shape_cast %56 : vector<8xf32> to vector<8x1xf32>
    %c0_31 = arith.constant 0 : index
    %c0_32 = arith.constant 0 : index
    %58 = vector.load %arg11[%c0_31, %c0_32] : memref<1x1xf32, #tpu.memory_space<vmem>>, vector<1x1xf32>
    %59 = vector.broadcast %58 : vector<1x1xf32> to vector<8x1xf32>
    %60 = arith.addf %57, %59 : vector<8x1xf32>
    %cst_33 = arith.constant 0.000000e+00 : f32
    %61 = vector.broadcast %cst_33 : f32 to vector<8x1xf32>
    %62 = arith.subf %61, %60 : vector<8x1xf32>
    %63 = math.exp %62 : vector<8x1xf32>
    %cst_34 = arith.constant 1.000000e+00 : f32
    %64 = vector.broadcast %cst_34 : f32 to vector<8x1xf32>
    %65 = arith.addf %64, %63 : vector<8x1xf32>
    %66 = tpu.reciprocal %65 {approx = true} : vector<8x1xf32> -> vector<8x1xf32>
    %c0_35 = arith.constant 0 : index
    %c0_36 = arith.constant 0 : index
    %67 = vector.load %arg12[%c0_35, %c0_36] : memref<8x1xf32, #tpu.memory_space<vmem>>, vector<8x1xf32>
    tpu.vector_store %arg12[%c0_35, %c0_36], %66 {strides = array<i32>} : memref<8x1xf32, #tpu.memory_space<vmem>>, vector<8x1xf32>,
    return
  }
  func.func @transform_0(%arg0: i32) -> (i32, i32) {
    %c0_i32 = arith.constant 0 : i32
    %c0_i32_0 = arith.constant 0 : i32
    return %arg0, %c0_i32 : i32, i32
  }
  func.func @transform_1(%arg0: i32) -> (i32, i32) {
    %c0_i32 = arith.constant 0 : i32
    %c0_i32_0 = arith.constant 0 : i32
    return %arg0, %c0_i32 : i32, i32
  }
  func.func @transform_2(%arg0: i32) -> (i32, i32) {
    %c0_i32 = arith.constant 0 : i32
    %c0_i32_0 = arith.constant 0 : i32
    %c0_i32_1 = arith.constant 0 : i32
    return %c0_i32, %c0_i32_0 : i32, i32
  }
  func.func @transform_3(%arg0: i32) -> (i32, i32) {
    %c0_i32 = arith.constant 0 : i32
    %c0_i32_0 = arith.constant 0 : i32
    %c0_i32_1 = arith.constant 0 : i32
    return %c0_i32, %c0_i32_0 : i32, i32
  }
  func.func @transform_4(%arg0: i32) -> (i32, i32) {
    %c0_i32 = arith.constant 0 : i32
    %c0_i32_0 = arith.constant 0 : i32
    %c0_i32_1 = arith.constant 0 : i32
    return %c0_i32, %c0_i32_0 : i32, i32
  }
  func.func @transform_5(%arg0: i32) -> (i32, i32) {
    %c0_i32 = arith.constant 0 : i32
    %c0_i32_0 = arith.constant 0 : i32
    %c0_i32_1 = arith.constant 0 : i32
    return %c0_i32, %c0_i32_0 : i32, i32
  }
  func.func @transform_6(%arg0: i32) -> (i32, i32) {
    %c0_i32 = arith.constant 0 : i32
    %c0_i32_0 = arith.constant 0 : i32
    %c0_i32_1 = arith.constant 0 : i32
    return %c0_i32, %c0_i32_0 : i32, i32
  }
  func.func @transform_7(%arg0: i32) -> (i32, i32) {
    %c0_i32 = arith.constant 0 : i32
    %c0_i32_0 = arith.constant 0 : i32
    %c0_i32_1 = arith.constant 0 : i32
    return %c0_i32, %c0_i32_0 : i32, i32
  }
  func.func @transform_8(%arg0: i32) -> (i32, i32) {
    %c0_i32 = arith.constant 0 : i32
    %c0_i32_0 = arith.constant 0 : i32
    %c0_i32_1 = arith.constant 0 : i32
    return %c0_i32, %c0_i32_0 : i32, i32
  }
  func.func @transform_9(%arg0: i32) -> (i32, i32) {
    %c0_i32 = arith.constant 0 : i32
    %c0_i32_0 = arith.constant 0 : i32
    %c0_i32_1 = arith.constant 0 : i32
    return %c0_i32, %c0_i32_0 : i32, i32
  }
  func.func @transform_10(%arg0: i32) -> (i32, i32) {
    %c0_i32 = arith.constant 0 : i32
    %c0_i32_0 = arith.constant 0 : i32
    %c0_i32_1 = arith.constant 0 : i32
    return %c0_i32, %c0_i32_0 : i32, i32
  }
  func.func @transform_11(%arg0: i32) -> (i32, i32) {
    %c0_i32 = arith.constant 0 : i32
    %c0_i32_0 = arith.constant 0 : i32
    return %arg0, %c0_i32 : i32, i32
  }
}

</mosaic_0001>

<llo_original>
// kernel: tpu_custom_call.1
$region0: #{tpu_custom_call.1}
  #allocation0 [shape = 'u32[]', space=smem, size = 0x4, offset = 0x4, fixed_abs, tag = 'smem constant byte address 0x4 - core index']
  #allocation1 [shape = 'u32[144,128]{1,0:T(1,128)}', space=vmem, size = 0x12000, scoped, tag = 'internal scratch']
  #allocation2 [shape = 'f32[1,1]{1,0:T(1,128)S(1)}', space=vmem, size = 0x200, scoped, tag = 'scoped memory for tpu_custom_call.1']
  %s0 = inlined_call_operand.hbm [shape: f32[8,100], index: 0, kind: input, shape index: {}]
  %s1 = inlined_call_operand.hbm [shape: f32[8,10], index: 1, kind: input, shape index: {}]
  %s2 = inlined_call_operand.hbm [shape: bf16[100,128], index: 2, kind: input, shape index: {}]
  %s3 = inlined_call_operand.hbm [shape: bf16[10,128], index: 3, kind: input, shape index: {}]
  %s4 = inlined_call_operand.vmem [shape: f32[1,128], index: 4, kind: input, shape index: {}]
  %s5 = inlined_call_operand.hbm [shape: bf16[128,128], index: 5, kind: input, shape index: {}]
  %s6 = inlined_call_operand.vmem [shape: f32[1,128], index: 6, kind: input, shape index: {}]
  %s7 = inlined_call_operand.hbm [shape: bf16[128,512], index: 7, kind: input, shape index: {}]
  %s8 = inlined_call_operand.vmem [shape: f32[1,512], index: 8, kind: input, shape index: {}]
  %s9 = inlined_call_operand.vmem [shape: f32[1,256], index: 9, kind: input, shape index: {}]
  %s10 = inlined_call_operand.<no memory space> [shape: f32[1,1], index: 10, kind: input, shape index: {}]
  %s11 = inlined_call_operand.vmem [shape: f32[8,1], index: 11, kind: output, shape index: {}]
  %s12 = sld [smem:[#allocation0]]
  $region78: #{tpu_custom_call.1} parent=0
    _
  %s14 = ssub.s32 1, %s12
  %s15 = scalar_select 0, %s14, %s12
  %v16 = vstv %s10
  %17 = vst [vmem:[#allocation2] sm:$0x1] %v16
  $region1: #{tpu_custom_call.1} parent=0
    #allocation3 [shape = 'u8[4096]{0}', space=vmem, size = 0x1000, scoped, tag = 'input window, operand 0, single buffered']
    #allocation4 [shape = 's32[1]{0}', space=sflag, size = 0x4, scoped, tag = 'scoped memory for tpu_custom_call.1']
    #allocation5 [shape = 'u8[4096]{0}', space=vmem, size = 0x1000, scoped, tag = 'input window, operand 1, single buffered']
    #allocation6 [shape = 's32[1]{0}', space=sflag, size = 0x4, scoped, tag = 'scoped memory for tpu_custom_call.1']
    #allocation7 [shape = 'u8[26624]{0}', space=vmem, size = 0x6800, scoped, tag = 'input window, operand 2, single buffered']
    #allocation8 [shape = 'u8[4096]{0}', space=vmem, size = 0x1000, scoped, tag = 'input window, operand 3, single buffered']
    #allocation9 [shape = 's32[1]{0}', space=sflag, size = 0x4, scoped, tag = 'scoped memory for tpu_custom_call.1']
    #allocation10 [shape = 'u8[32768]{0}', space=vmem, size = 0x8000, scoped, tag = 'input window, operand 5, single buffered']
    #allocation11 [shape = 'u8[131072]{0}', space=vmem, size = 0x20000, scoped, tag = 'input window, operand 7, single buffered']
    #allocation12 [shape = 's32[1]{0}', space=sflag, size = 0x4, scoped, tag = 'scoped memory for tpu_custom_call.1']
    %18 = vsyncpa [#allocation4], 0
    %19 = vsyncpa [#allocation6], 0
    %20 = vsyncpa [#allocation9], 0
    %21 = vsyncpa [#allocation12], 0
    // Predicated region
    $region2: #{tpu_custom_call.1} parent=1 // pred_check
      _
    $region3: #{tpu_custom_call.1} parent=1 // pred_check_branch
      %23 = sbr.rel (0) target = $region5
    $region4: #{tpu_custom_call.1} parent=1 // pred_region
      %s25 = ssub.s32 128, 128
      %26 = vsyncadd [#allocation4], %s25
      %s28 = sshll.u32 [#allocation3], 4
      %s29 = int_to_ptr.vmem [resolvable:$true] %s28
      %31 = dma.hbm_to_vmem [thread:$0]  %s0, 128, %s29, [#allocation4]
    $region5: #{tpu_custom_call.1} parent=1 // pred_fallthru
      _
    // Predicated region
    $region6: #{tpu_custom_call.1} parent=1 // pred_check
      _
    $region7: #{tpu_custom_call.1} parent=1 // pred_check_branch
      %33 = sbr.rel (0) target = $region9
    $region8: #{tpu_custom_call.1} parent=1 // pred_region
      %s35 = ssub.s32 128, 128
      %36 = vsyncadd [#allocation6], %s35
      %s38 = sshll.u32 [#allocation5], 4
      %s39 = int_to_ptr.vmem [resolvable:$true] %s38
      %41 = dma.hbm_to_vmem [thread:$0]  %s1, 128, %s39, [#allocation6]
    $region9: #{tpu_custom_call.1} parent=1 // pred_fallthru
      _
    // Predicated region
    $region10: #{tpu_custom_call.1} parent=1 // pred_check
      _
    $region11: #{tpu_custom_call.1} parent=1 // pred_check_branch
      %43 = sbr.rel (0) target = $region13
    $region12: #{tpu_custom_call.1} parent=1 // pred_region
      %s45 = ssub.s32 832, 832
      %46 = vsyncadd [#allocation6], %s45
      %s47 = sshll.u32 [#allocation7], 4
      %s48 = int_to_ptr.vmem [resolvable:$true] %s47
      %53 = dma.hbm_to_vmem [thread:$0]  %s2, 832, %s48, [#allocation6], 64, 64, 4
    $region13: #{tpu_custom_call.1} parent=1 // pred_fallthru
      _
    // Predicated region
    $region14: #{tpu_custom_call.1} parent=1 // pred_check
      _
    $region15: #{tpu_custom_call.1} parent=1 // pred_check_branch
      %55 = sbr.rel (0) target = $region17
    $region16: #{tpu_custom_call.1} parent=1 // pred_region
      %s57 = ssub.s32 128, 128
      %58 = vsyncadd [#allocation9], %s57
      %s59 = sshll.u32 [#allocation8], 4
      %s60 = int_to_ptr.vmem [resolvable:$true] %s59
      %65 = dma.hbm_to_vmem [thread:$0]  %s3, 128, %s60, [#allocation9], 64, 64, 4
    $region17: #{tpu_custom_call.1} parent=1 // pred_fallthru
      _
    // Predicated region
    $region18: #{tpu_custom_call.1} parent=1 // pred_check
      _
    $region19: #{tpu_custom_call.1} parent=1 // pred_check_branch
      %67 = sbr.rel (0) target = $region21
    $region20: #{tpu_custom_call.1} parent=1 // pred_region
      _
    $region21: #{tpu_custom_call.1} parent=1 // pred_fallthru
      _
    // Predicated region
    $region22: #{tpu_custom_call.1} parent=1 // pred_check
      _
    $region23: #{tpu_custom_call.1} parent=1 // pred_check_branch
      %69 = sbr.rel (0) target = $region25
    $region24: #{tpu_custom_call.1} parent=1 // pred_region
      %s71 = ssub.s32 1024, 1024
      %72 = vsyncadd [#allocation9], %s71
      %s73 = sshll.u32 [#allocation10], 4
      %s74 = int_to_ptr.vmem [resolvable:$true] %s73
      %79 = dma.hbm_to_vmem [thread:$0]  %s5, 1024, %s74, [#allocation9], 64, 64, 4
    $region25: #{tpu_custom_call.1} parent=1 // pred_fallthru
      _
    // Predicated region
    $region26: #{tpu_custom_call.1} parent=1 // pred_check
      _
    $region27: #{tpu_custom_call.1} parent=1 // pred_check_branch
      %81 = sbr.rel (0) target = $region29
    $region28: #{tpu_custom_call.1} parent=1 // pred_region
      _
    $region29: #{tpu_custom_call.1} parent=1 // pred_fallthru
      _
    // Predicated region
    $region30: #{tpu_custom_call.1} parent=1 // pred_check
      _
    $region31: #{tpu_custom_call.1} parent=1 // pred_check_branch
      %83 = sbr.rel (0) target = $region33
    $region32: #{tpu_custom_call.1} parent=1 // pred_region
      %s85 = ssub.s32 4096, 4096
      %86 = vsyncadd [#allocation12], %s85
      %s87 = sshll.u32 [#allocation11], 4
      %s88 = int_to_ptr.vmem [resolvable:$true] %s87
      %93 = dma.hbm_to_vmem [thread:$0]  %s7, 4096, %s88, [#allocation12], 256, 256, 16
    $region33: #{tpu_custom_call.1} parent=1 // pred_fallthru
      _
    // Predicated region
    $region34: #{tpu_custom_call.1} parent=1 // pred_check
      _
    $region35: #{tpu_custom_call.1} parent=1 // pred_check_branch
      %95 = sbr.rel (0) target = $region37
    $region36: #{tpu_custom_call.1} parent=1 // pred_region
      _
    $region37: #{tpu_custom_call.1} parent=1 // pred_fallthru
      _
    // Predicated region
    $region38: #{tpu_custom_call.1} parent=1 // pred_check
      _
    $region39: #{tpu_custom_call.1} parent=1 // pred_check_branch
      %97 = sbr.rel (0) target = $region41
    $region40: #{tpu_custom_call.1} parent=1 // pred_region
      _
    $region41: #{tpu_custom_call.1} parent=1 // pred_fallthru
      _
    // Predicated region
    $region42: #{tpu_custom_call.1} parent=1 // pred_check
      _
    $region43: #{tpu_custom_call.1} parent=1 // pred_check_branch
      %99 = sbr.rel (0) target = $region45
    $region44: #{tpu_custom_call.1} parent=1 // pred_region
      _
    $region45: #{tpu_custom_call.1} parent=1 // pred_fallthru
      _
    // Predicated region
    $region46: #{tpu_custom_call.1} parent=1 // pred_check
      _
    $region47: #{tpu_custom_call.1} parent=1 // pred_check_branch
      %101 = sbr.rel (0) target = $region49
    $region48: #{tpu_custom_call.1} parent=1 // pred_region
      %102 = dma.done [#allocation4], 128
    $region49: #{tpu_custom_call.1} parent=1 // pred_fallthru
      _
    // Predicated region
    $region50: #{tpu_custom_call.1} parent=1 // pred_check
      _
    $region51: #{tpu_custom_call.1} parent=1 // pred_check_branch
      %104 = sbr.rel (0) target = $region53
    $region52: #{tpu_custom_call.1} parent=1 // pred_region
      %105 = dma.done [#allocation6], 128
    $region53: #{tpu_custom_call.1} parent=1 // pred_fallthru
      _
    // Predicated region
    $region54: #{tpu_custom_call.1} parent=1 // pred_check
      _
    $region55: #{tpu_custom_call.1} parent=1 // pred_check_branch
      %107 = sbr.rel (0) target = $region57
    $region56: #{tpu_custom_call.1} parent=1 // pred_region
      %108 = dma.done [#allocation6], 832
    $region57: #{tpu_custom_call.1} parent=1 // pred_fallthru
      _
    // Predicated region
    $region58: #{tpu_custom_call.1} parent=1 // pred_check
      _
    $region59: #{tpu_custom_call.1} parent=1 // pred_check_branch
      %110 = sbr.rel (0) target = $region61
    $region60: #{tpu_custom_call.1} parent=1 // pred_region
      %111 = dma.done [#allocation9], 128
    $region61: #{tpu_custom_call.1} parent=1 // pred_fallthru
      _
    // Predicated region
    $region62: #{tpu_custom_call.1} parent=1 // pred_check
      _
    $region63: #{tpu_custom_call.1} parent=1 // pred_check_branch
      %113 = sbr.rel (0) target = $region65
    $region64: #{tpu_custom_call.1} parent=1 // pred_region
      %114 = dma.done [#allocation9], 1024
    $region65: #{tpu_custom_call.1} parent=1 // pred_fallthru
      _
    // Predicated region
    $region66: #{tpu_custom_call.1} parent=1 // pred_check
      _
    $region67: #{tpu_custom_call.1} parent=1 // pred_check_branch
      %116 = sbr.rel (0) target = $region69
    $region68: #{tpu_custom_call.1} parent=1 // pred_region
      %117 = dma.done [#allocation12], 4096
    $region69: #{tpu_custom_call.1} parent=1 // pred_fallthru
      _
    %v119 = vld [vmem:[#allocation3] sm:$0xff]
    %v120 = vpack.c.bf16 %v119, %v119
    %v121 = vld [vmem:[#allocation5] sm:$0xff]
    %v122 = vpack.c.bf16 %v121, %v121
    %v123 = vld [vmem:[#allocation7] sm:$0xf]
    %v124 = vld [vmem:[#allocation7 + $0x4] sm:$0xf]
    %v125 = vld [vmem:[#allocation7 + $0x8] sm:$0xf]
    %v126 = vld [vmem:[#allocation7 + $0xc] sm:$0xf]
    %v127 = vld [vmem:[#allocation7 + $0x10] sm:$0xf]
    %v128 = vld [vmem:[#allocation7 + $0x14] sm:$0xf]
    %v129 = vld [vmem:[#allocation7 + $0x18] sm:$0xf]
    %v130 = vld [vmem:[#allocation7 + $0x1c] sm:$0xf]
    %v131 = vld [vmem:[#allocation7 + $0x20] sm:$0xf]
    %v132 = vld [vmem:[#allocation7 + $0x24] sm:$0xf]
    %v133 = vld [vmem:[#allocation7 + $0x28] sm:$0xf]
    %v134 = vld [vmem:[#allocation7 + $0x2c] sm:$0xf]
    %v135 = vld [vmem:[#allocation7 + $0x30] sm:$0x3]
    %v136 = vld [vmem:[#allocation8] sm:$0xf]
    %v137 = vld [vmem:[#allocation8 + $0x4] sm:$0x1]
    %v140 = vunpack.c.l.b16 %v136
    %v141 = vunpack.c.l.b16 %v137
    %v142 = vpack.c.b16 %v141, %v140
    %vm143 = vcmask 80896
    %v145 = vsel %vm143, %v122, 0
    %vm147 = vcmask 1044480
    %v149 = vsel %vm147, %v142, 0
    %151 = vmatprep.subr.bf16.mxu0 0
    %152 = vmatpush1.bf16.msra.mxu0 0
    %153 = vmatprep.subr.bf16.mxu0 0
    %154 = vmatpush1.bf16.msra.mxu0 0
    %155 = vmatprep.subr.bf16.mxu0 0
    %156 = vmatpush1.bf16.msra.mxu0 0
    %157 = vmatprep.subr.bf16.mxu0 0
    %158 = vmatpush1.bf16.msra.mxu0 0
    %159 = vmatprep.subr.bf16.mxu0 0
    %160 = vmatpush1.bf16.msra.mxu0 0
    %161 = vmatprep.subr.bf16.mxu0 0
    %162 = vmatpush1.bf16.msra.mxu0 0
    %163 = vmatprep.subr.bf16.mxu0 0
    %164 = vmatpush1.bf16.msra.mxu0 0
    %165 = vmatprep.subr.bf16.mxu0 0
    %166 = vmatpush1.bf16.msra.mxu0 %v149
    %167 = vmatprep.subr.bf16.mxu0 0
    %168 = vmatpush2.bf16.msra.mxu0 0
    %169 = vmatprep.subr.bf16.mxu0 0
    %170 = vmatpush2.bf16.msra.mxu0 0
    %171 = vmatprep.subr.bf16.mxu0 0
    %172 = vmatpush2.bf16.msra.mxu0 0
    %173 = vmatprep.subr.bf16.mxu0 0
    %174 = vmatpush2.bf16.msra.mxu0 0
    %175 = vmatprep.subr.bf16.mxu0 0
    %176 = vmatpush2.bf16.msra.mxu0 0
    %177 = vmatprep.subr.bf16.mxu0 0
    %178 = vmatpush2.bf16.msra.mxu0 0
    %179 = vmatprep.subr.bf16.mxu0 0
    %180 = vmatpush2.bf16.msra.mxu0 0
    %181 = vmatprep.subr.bf16.mxu0 0
    %182 = vmatpush2.bf16.msra.mxu0 0
    %183 = vmatprep.mubr.bf16.mxu0 0
    %184 = vmatmul.mubr.bf16.gmra.mxu0 %v145
    %v185 = vpop.f32.mrf.mxu0
    %v186 = vadd.f32 0.0, %v185
    %v187 = vpop.f32.mrf.mxu0
    %v188 = vpop.f32.mrf.mxu0
    %v189 = vpop.f32.mrf.mxu0
    %190 = vdwg.mxu0
    %v204 = vunpack.c.l.b16 %v123
    %v205 = vunpack.c.l.b16 %v124
    %v206 = vunpack.c.l.b16 %v125
    %v207 = vunpack.c.l.b16 %v126
    %v208 = vunpack.c.l.b16 %v127
    %v209 = vunpack.c.l.b16 %v128
    %v210 = vunpack.c.l.b16 %v129
    %v211 = vunpack.c.l.b16 %v130
    %v212 = vunpack.c.l.b16 %v131
    %v213 = vunpack.c.l.b16 %v132
    %v214 = vunpack.c.l.b16 %v133
    %v215 = vunpack.c.l.b16 %v134
    %v216 = vunpack.c.l.b16 %v135
    %v217 = vpack.c.b16 %v205, %v204
    %v218 = vpack.c.b16 %v207, %v206
    %v219 = vpack.c.b16 %v209, %v208
    %v220 = vpack.c.b16 %v211, %v210
    %v221 = vpack.c.b16 %v213, %v212
    %v222 = vpack.c.b16 %v215, %v214
    %v223 = vpack.c.b16 %v216, %v216
    %vm230 = vcmask 818176
    %v232 = vsel %vm230, %v120, 0
    %vm234 = vcmask 1041408
    %v236 = vsel %vm234, %v223, 0
    %238 = vmatprep.subr.bf16.mxu0 0
    %239 = vmatpush1.bf16.msra.mxu0 0
    %240 = vmatprep.subr.bf16.mxu0 0
    %241 = vmatpush1.bf16.msra.mxu0 %v236
    %242 = vmatprep.subr.bf16.mxu0 0
    %243 = vmatpush1.bf16.msra.mxu0 %v222
    %244 = vmatprep.subr.bf16.mxu0 0
    %245 = vmatpush1.bf16.msra.mxu0 %v221
    %246 = vmatprep.subr.bf16.mxu0 0
    %247 = vmatpush1.bf16.msra.mxu0 %v220
    %248 = vmatprep.subr.bf16.mxu0 0
    %249 = vmatpush1.bf16.msra.mxu0 %v219
    %250 = vmatprep.subr.bf16.mxu0 0
    %251 = vmatpush1.bf16.msra.mxu0 %v218
    %252 = vmatprep.subr.bf16.mxu0 0
    %253 = vmatpush1.bf16.msra.mxu0 %v217
    %254 = vmatprep.subr.bf16.mxu0 0
    %255 = vmatpush2.bf16.msra.mxu0 0
    %256 = vmatprep.subr.bf16.mxu0 0
    %257 = vmatpush2.bf16.msra.mxu0 0
    %258 = vmatprep.subr.bf16.mxu0 0
    %259 = vmatpush2.bf16.msra.mxu0 0
    %260 = vmatprep.subr.bf16.mxu0 0
    %261 = vmatpush2.bf16.msra.mxu0 0
    %262 = vmatprep.subr.bf16.mxu0 0
    %263 = vmatpush2.bf16.msra.mxu0 0
    %264 = vmatprep.subr.bf16.mxu0 0
    %265 = vmatpush2.bf16.msra.mxu0 0
    %266 = vmatprep.subr.bf16.mxu0 0
    %267 = vmatpush2.bf16.msra.mxu0 0
    %268 = vmatprep.subr.bf16.mxu0 0
    %269 = vmatpush2.bf16.msra.mxu0 0
    %270 = vmatprep.mubr.bf16.mxu0 0
    %271 = vmatmul.mubr.bf16.gmra.mxu0 %v232
    %v272 = vpop.f32.mrf.mxu0
    %v273 = vadd.f32 %v186, %v272
    %v274 = vpop.f32.mrf.mxu0
    %v275 = vpop.f32.mrf.mxu0
    %v276 = vpop.f32.mrf.mxu0
    %277 = vdwg.mxu0
    %v278 = vld [vmem:[%s4] sm:$0x1]
    %v280 = vlaneseq
    %v281 = vshrl.u32 %v280, 7
    %v282 = vsub.s32 0, %v281
    %v283 = vrot.slane %v278, %v282
    %v285 = vadd.f32 %v273, %v283
    %v286 = vpack.c.bf16 %v285, %v285
    %v287 = vld [vmem:[#allocation10] sm:$0xf]
    %v288 = vld [vmem:[#allocation10 + $0x4] sm:$0xf]
    %v289 = vld [vmem:[#allocation10 + $0x8] sm:$0xf]
    %v290 = vld [vmem:[#allocation10 + $0xc] sm:$0xf]
    %v291 = vld [vmem:[#allocation10 + $0x10] sm:$0xf]
    %v292 = vld [vmem:[#allocation10 + $0x14] sm:$0xf]
    %v293 = vld [vmem:[#allocation10 + $0x18] sm:$0xf]
    %v294 = vld [vmem:[#allocation10 + $0x1c] sm:$0xf]
    %v295 = vld [vmem:[#allocation10 + $0x20] sm:$0xf]
    %v296 = vld [vmem:[#allocation10 + $0x24] sm:$0xf]
    %v297 = vld [vmem:[#allocation10 + $0x28] sm:$0xf]
    %v298 = vld [vmem:[#allocation10 + $0x2c] sm:$0xf]
    %v299 = vld [vmem:[#allocation10 + $0x30] sm:$0xf]
    %v300 = vld [vmem:[#allocation10 + $0x34] sm:$0xf]
    %v301 = vld [vmem:[#allocation10 + $0x38] sm:$0xf]
    %v302 = vld [vmem:[#allocation10 + $0x3c] sm:$0xf]
    %v303 = vld [vmem:[%s6] sm:$0x1]
    %v305 = vlaneseq
    %v306 = vshrl.u32 %v305, 7
    %v307 = vsub.s32 0, %v306
    %v308 = vrot.slane %v303, %v307
    %v326 = vunpack.c.l.b16 %v287
    %v327 = vunpack.c.l.b16 %v288
    %v328 = vunpack.c.l.b16 %v289
    %v329 = vunpack.c.l.b16 %v290
    %v330 = vunpack.c.l.b16 %v291
    %v331 = vunpack.c.l.b16 %v292
    %v332 = vunpack.c.l.b16 %v293
    %v333 = vunpack.c.l.b16 %v294
    %v334 = vunpack.c.l.b16 %v295
    %v335 = vunpack.c.l.b16 %v296
    %v336 = vunpack.c.l.b16 %v297
    %v337 = vunpack.c.l.b16 %v298
    %v338 = vunpack.c.l.b16 %v299
    %v339 = vunpack.c.l.b16 %v300
    %v340 = vunpack.c.l.b16 %v301
    %v341 = vunpack.c.l.b16 %v302
    %v342 = vpack.c.b16 %v327, %v326
    %v343 = vpack.c.b16 %v329, %v328
    %v344 = vpack.c.b16 %v331, %v330
    %v345 = vpack.c.b16 %v333, %v332
    %v346 = vpack.c.b16 %v335, %v334
    %v347 = vpack.c.b16 %v337, %v336
    %v348 = vpack.c.b16 %v339, %v338
    %v349 = vpack.c.b16 %v341, %v340
    %358 = vmatprep.subr.bf16.mxu0 0
    %359 = vmatpush1.bf16.msra.mxu0 %v349
    %360 = vmatprep.subr.bf16.mxu0 0
    %361 = vmatpush1.bf16.msra.mxu0 %v348
    %362 = vmatprep.subr.bf16.mxu0 0
    %363 = vmatpush1.bf16.msra.mxu0 %v347
    %364 = vmatprep.subr.bf16.mxu0 0
    %365 = vmatpush1.bf16.msra.mxu0 %v346
    %366 = vmatprep.subr.bf16.mxu0 0
    %367 = vmatpush1.bf16.msra.mxu0 %v345
    %368 = vmatprep.subr.bf16.mxu0 0
    %369 = vmatpush1.bf16.msra.mxu0 %v344
    %370 = vmatprep.subr.bf16.mxu0 0
    %371 = vmatpush1.bf16.msra.mxu0 %v343
    %372 = vmatprep.subr.bf16.mxu0 0
    %373 = vmatpush1.bf16.msra.mxu0 %v342
    %374 = vmatprep.subr.bf16.mxu0 0
    %375 = vmatpush2.bf16.msra.mxu0 0
    %376 = vmatprep.subr.bf16.mxu0 0
    %377 = vmatpush2.bf16.msra.mxu0 0
    %378 = vmatprep.subr.bf16.mxu0 0
    %379 = vmatpush2.bf16.msra.mxu0 0
    %380 = vmatprep.subr.bf16.mxu0 0
    %381 = vmatpush2.bf16.msra.mxu0 0
    %382 = vmatprep.subr.bf16.mxu0 0
    %383 = vmatpush2.bf16.msra.mxu0 0
    %384 = vmatprep.subr.bf16.mxu0 0
    %385 = vmatpush2.bf16.msra.mxu0 0
    %386 = vmatprep.subr.bf16.mxu0 0
    %387 = vmatpush2.bf16.msra.mxu0 0
    %388 = vmatprep.subr.bf16.mxu0 0
    %389 = vmatpush2.bf16.msra.mxu0 0
    %390 = vmatprep.mubr.bf16.mxu0 0
    %391 = vmatmul.mubr.bf16.gmra.mxu0 %v286
    %v392 = vpop.f32.mrf.mxu0
    %v393 = vadd.f32 %v308, %v392
    %v394 = vpop.f32.mrf.mxu0
    %v395 = vpop.f32.mrf.mxu0
    %v396 = vpop.f32.mrf.mxu0
    %397 = vdwg.mxu0
    %vm398 = vcmp.gt.f32.partialorder %v393, 0.0
    %v399 = vmul.f32 %v393, 0.01
    %v400 = vsel %vm398, %v393, %v399
    %401 = vmax.xlane.f32.xlu0 %v400
    %v402 = vpop.xlane.xlu0 %401
    %v403 = vsub.f32 %v400, %v402
    %v404 = vmul.f32 %v403, 1.442695
    %v405 = vpow.pop %v404
    %406 = vadd.xlane.f32.xlu0 %v405
    %v407 = vpop.xlane.xlu0 %406
    %v408 = vrcp.pop %v407
    %v409 = vmul.f32 %v405, %v408
    %v410 = vmul.f32 %v285, %v409
    %v411 = vpack.c.bf16 %v410, %v410
    %v412 = vld [vmem:[#allocation11] sm:$0xff]
    %v413 = vld [vmem:[#allocation11 + $0x8] sm:$0xff]
    %v414 = vld [vmem:[#allocation11 + $0x10] sm:$0xff]
    %v415 = vld [vmem:[#allocation11 + $0x18] sm:$0xff]
    %v416 = vld [vmem:[#allocation11 + $0x20] sm:$0xff]
    %v417 = vld [vmem:[#allocation11 + $0x28] sm:$0xff]
    %v418 = vld [vmem:[#allocation11 + $0x30] sm:$0xff]
    %v419 = vld [vmem:[#allocation11 + $0x38] sm:$0xff]
    %v420 = vld [vmem:[#allocation11 + $0x40] sm:$0xff]
    %v421 = vld [vmem:[#allocation11 + $0x48] sm:$0xff]
    %v422 = vld [vmem:[#allocation11 + $0x50] sm:$0xff]
    %v423 = vld [vmem:[#allocation11 + $0x58] sm:$0xff]
    %v424 = vld [vmem:[#allocation11 + $0x60] sm:$0xff]
    %v425 = vld [vmem:[#allocation11 + $0x68] sm:$0xff]
    %v426 = vld [vmem:[#allocation11 + $0x70] sm:$0xff]
    %v427 = vld [vmem:[#allocation11 + $0x78] sm:$0xff]
    %v428 = vld [vmem:[#allocation11 + $0x80] sm:$0xff]
    %v429 = vld [vmem:[#allocation11 + $0x88] sm:$0xff]
    %v430 = vld [vmem:[#allocation11 + $0x90] sm:$0xff]
    %v431 = vld [vmem:[#allocation11 + $0x98] sm:$0xff]
    %v432 = vld [vmem:[#allocation11 + $0xa0] sm:$0xff]
    %v433 = vld [vmem:[#allocation11 + $0xa8] sm:$0xff]
    %v434 = vld [vmem:[#allocation11 + $0xb0] sm:$0xff]
    %v435 = vld [vmem:[#allocation11 + $0xb8] sm:$0xff]
    %v436 = vld [vmem:[#allocation11 + $0xc0] sm:$0xff]
    %v437 = vld [vmem:[#allocation11 + $0xc8] sm:$0xff]
    %v438 = vld [vmem:[#allocation11 + $0xd0] sm:$0xff]
    %v439 = vld [vmem:[#allocation11 + $0xd8] sm:$0xff]
    %v440 = vld [vmem:[#allocation11 + $0xe0] sm:$0xff]
    %v441 = vld [vmem:[#allocation11 + $0xe8] sm:$0xff]
    %v442 = vld [vmem:[#allocation11 + $0xf0] sm:$0xff]
    %v443 = vld [vmem:[#allocation11 + $0xf8] sm:$0xff]
    %v444 = vld [vmem:[%s8] sm:$0xf]
    %v446 = vlaneseq
    %v447 = vshrl.u32 %v446, 7
    %v448 = vsub.s32 0, %v447
    %v449 = vrot.slane %v444, %v448
    %v450 = vlaneseq
    %v451 = vshrl.u32 %v450, 7
    %v452 = vsub.s32 1, %v451
    %v453 = vrot.slane %v444, %v452
    %v454 = vlaneseq
    %v455 = vshrl.u32 %v454, 7
    %v456 = vsub.s32 2, %v455
    %v457 = vrot.slane %v444, %v456
    %v458 = vlaneseq
    %v459 = vshrl.u32 %v458, 7
    %v460 = vsub.s32 3, %v459
    %v461 = vrot.slane %v444, %v460
    %v498 = vunpack.c.l.b16 %v412
    %v499 = vunpack.c.h.b16 %v412
    %v500 = vunpack.c.l.b16 %v413
    %v501 = vunpack.c.h.b16 %v413
    %v502 = vunpack.c.l.b16 %v414
    %v503 = vunpack.c.h.b16 %v414
    %v504 = vunpack.c.l.b16 %v415
    %v505 = vunpack.c.h.b16 %v415
    %v506 = vunpack.c.l.b16 %v416
    %v507 = vunpack.c.h.b16 %v416
    %v508 = vunpack.c.l.b16 %v417
    %v509 = vunpack.c.h.b16 %v417
    %v510 = vunpack.c.l.b16 %v418
    %v511 = vunpack.c.h.b16 %v418
    %v512 = vunpack.c.l.b16 %v419
    %v513 = vunpack.c.h.b16 %v419
    %v514 = vunpack.c.l.b16 %v420
    %v515 = vunpack.c.h.b16 %v420
    %v516 = vunpack.c.l.b16 %v421
    %v517 = vunpack.c.h.b16 %v421
    %v518 = vunpack.c.l.b16 %v422
    %v519 = vunpack.c.h.b16 %v422
    %v520 = vunpack.c.l.b16 %v423
    %v521 = vunpack.c.h.b16 %v423
    %v522 = vunpack.c.l.b16 %v424
    %v523 = vunpack.c.h.b16 %v424
    %v524 = vunpack.c.l.b16 %v425
    %v525 = vunpack.c.h.b16 %v425
    %v526 = vunpack.c.l.b16 %v426
    %v527 = vunpack.c.h.b16 %v426
    %v528 = vunpack.c.l.b16 %v427
    %v529 = vunpack.c.h.b16 %v427
    %v530 = vunpack.c.l.b16 %v428
    %v531 = vunpack.c.h.b16 %v428
    %v532 = vunpack.c.l.b16 %v429
    %v533 = vunpack.c.h.b16 %v429
    %v534 = vunpack.c.l.b16 %v430
    %v535 = vunpack.c.h.b16 %v430
    %v536 = vunpack.c.l.b16 %v431
    %v537 = vunpack.c.h.b16 %v431
    %v538 = vunpack.c.l.b16 %v432
    %v539 = vunpack.c.h.b16 %v432
    %v540 = vunpack.c.l.b16 %v433
    %v541 = vunpack.c.h.b16 %v433
    %v542 = vunpack.c.l.b16 %v434
    %v543 = vunpack.c.h.b16 %v434
    %v544 = vunpack.c.l.b16 %v435
    %v545 = vunpack.c.h.b16 %v435
    %v546 = vunpack.c.l.b16 %v436
    %v547 = vunpack.c.h.b16 %v436
    %v548 = vunpack.c.l.b16 %v437
    %v549 = vunpack.c.h.b16 %v437
    %v550 = vunpack.c.l.b16 %v438
    %v551 = vunpack.c.h.b16 %v438
    %v552 = vunpack.c.l.b16 %v439
    %v553 = vunpack.c.h.b16 %v439
    %v554 = vunpack.c.l.b16 %v440
    %v555 = vunpack.c.h.b16 %v440
    %v556 = vunpack.c.l.b16 %v441
    %v557 = vunpack.c.h.b16 %v441
    %v558 = vunpack.c.l.b16 %v442
    %v559 = vunpack.c.h.b16 %v442
    %v560 = vunpack.c.l.b16 %v443
    %v561 = vunpack.c.h.b16 %v443
    %v562 = vpack.c.b16 %v502, %v498
    %v563 = vpack.c.b16 %v503, %v499
    %v564 = vpack.c.b16 %v504, %v500
    %v565 = vpack.c.b16 %v505, %v501
    %v566 = vpack.c.b16 %v510, %v506
    %v567 = vpack.c.b16 %v511, %v507
    %v568 = vpack.c.b16 %v512, %v508
    %v569 = vpack.c.b16 %v513, %v509
    %v570 = vpack.c.b16 %v518, %v514
    %v571 = vpack.c.b16 %v519, %v515
    %v572 = vpack.c.b16 %v520, %v516
    %v573 = vpack.c.b16 %v521, %v517
    %v574 = vpack.c.b16 %v526, %v522
    %v575 = vpack.c.b16 %v527, %v523
    %v576 = vpack.c.b16 %v528, %v524
    %v577 = vpack.c.b16 %v529, %v525
    %v578 = vpack.c.b16 %v534, %v530
    %v579 = vpack.c.b16 %v535, %v531
    %v580 = vpack.c.b16 %v536, %v532
    %v581 = vpack.c.b16 %v537, %v533
    %v582 = vpack.c.b16 %v542, %v538
    %v583 = vpack.c.b16 %v543, %v539
    %v584 = vpack.c.b16 %v544, %v540
    %v585 = vpack.c.b16 %v545, %v541
    %v586 = vpack.c.b16 %v550, %v546
    %v587 = vpack.c.b16 %v551, %v547
    %v588 = vpack.c.b16 %v552, %v548
    %v589 = vpack.c.b16 %v553, %v549
    %v590 = vpack.c.b16 %v558, %v554
    %v591 = vpack.c.b16 %v559, %v555
    %v592 = vpack.c.b16 %v560, %v556
    %v593 = vpack.c.b16 %v561, %v557
    %626 = vmatprep.subr.bf16.mxu0 %v591
    %627 = vmatpush1.bf16.msra.mxu0 %v590
    %628 = vmatprep.subr.bf16.mxu0 %v587
    %629 = vmatpush1.bf16.msra.mxu0 %v586
    %630 = vmatprep.subr.bf16.mxu0 %v583
    %631 = vmatpush1.bf16.msra.mxu0 %v582
    %632 = vmatprep.subr.bf16.mxu0 %v579
    %633 = vmatpush1.bf16.msra.mxu0 %v578
    %634 = vmatprep.subr.bf16.mxu0 %v575
    %635 = vmatpush1.bf16.msra.mxu0 %v574
    %636 = vmatprep.subr.bf16.mxu0 %v571
    %637 = vmatpush1.bf16.msra.mxu0 %v570
    %638 = vmatprep.subr.bf16.mxu0 %v567
    %639 = vmatpush1.bf16.msra.mxu0 %v566
    %640 = vmatprep.subr.bf16.mxu0 %v563
    %641 = vmatpush1.bf16.msra.mxu0 %v562
    %642 = vmatprep.subr.bf16.mxu0 0
    %643 = vmatpush2.bf16.msra.mxu0 0
    %644 = vmatprep.subr.bf16.mxu0 0
    %645 = vmatpush2.bf16.msra.mxu0 0
    %646 = vmatprep.subr.bf16.mxu0 0
    %647 = vmatpush2.bf16.msra.mxu0 0
    %648 = vmatprep.subr.bf16.mxu0 0
    %649 = vmatpush2.bf16.msra.mxu0 0
    %650 = vmatprep.subr.bf16.mxu0 0
    %651 = vmatpush2.bf16.msra.mxu0 0
    %652 = vmatprep.subr.bf16.mxu0 0
    %653 = vmatpush2.bf16.msra.mxu0 0
    %654 = vmatprep.subr.bf16.mxu0 0
    %655 = vmatpush2.bf16.msra.mxu0 0
    %656 = vmatprep.subr.bf16.mxu0 0
    %657 = vmatpush2.bf16.msra.mxu0 0
    %658 = vmatprep.mubr.bf16.mxu0 0
    %659 = vmatmul.mubr.bf16.gmra.mxu0 %v411
    %v660 = vpop.f32.mrf.mxu0
    %v661 = vadd.f32 %v449, %v660
    %v662 = vpop.f32.mrf.mxu0
    %v663 = vadd.f32 %v453, %v662
    %v664 = vpop.f32.mrf.mxu0
    %v665 = vpop.f32.mrf.mxu0
    %666 = vdwg.mxu0
    %667 = vmatprep.subr.bf16.mxu0 %v593
    %668 = vmatpush1.bf16.msra.mxu0 %v592
    %669 = vmatprep.subr.bf16.mxu0 %v589
    %670 = vmatpush1.bf16.msra.mxu0 %v588
    %671 = vmatprep.subr.bf16.mxu0 %v585
    %672 = vmatpush1.bf16.msra.mxu0 %v584
    %673 = vmatprep.subr.bf16.mxu0 %v581
    %674 = vmatpush1.bf16.msra.mxu0 %v580
    %675 = vmatprep.subr.bf16.mxu0 %v577
    %676 = vmatpush1.bf16.msra.mxu0 %v576
    %677 = vmatprep.subr.bf16.mxu0 %v573
    %678 = vmatpush1.bf16.msra.mxu0 %v572
    %679 = vmatprep.subr.bf16.mxu0 %v569
    %680 = vmatpush1.bf16.msra.mxu0 %v568
    %681 = vmatprep.subr.bf16.mxu0 %v565
    %682 = vmatpush1.bf16.msra.mxu0 %v564
    %683 = vmatprep.subr.bf16.mxu0 0
    %684 = vmatpush2.bf16.msra.mxu0 0
    %685 = vmatprep.subr.bf16.mxu0 0
    %686 = vmatpush2.bf16.msra.mxu0 0
    %687 = vmatprep.subr.bf16.mxu0 0
    %688 = vmatpush2.bf16.msra.mxu0 0
    %689 = vmatprep.subr.bf16.mxu0 0
    %690 = vmatpush2.bf16.msra.mxu0 0
    %691 = vmatprep.subr.bf16.mxu0 0
    %692 = vmatpush2.bf16.msra.mxu0 0
    %693 = vmatprep.subr.bf16.mxu0 0
    %694 = vmatpush2.bf16.msra.mxu0 0
    %695 = vmatprep.subr.bf16.mxu0 0
    %696 = vmatpush2.bf16.msra.mxu0 0
    %697 = vmatprep.subr.bf16.mxu0 0
    %698 = vmatpush2.bf16.msra.mxu0 0
    %699 = vmatprep.mubr.bf16.mxu0 0
    %700 = vmatmul.mubr.bf16.gmra.mxu0 %v411
    %v701 = vpop.f32.mrf.mxu0
    %v702 = vadd.f32 %v457, %v701
    %v703 = vpop.f32.mrf.mxu0
    %v704 = vadd.f32 %v461, %v703
    %v705 = vpop.f32.mrf.mxu0
    %v706 = vpop.f32.mrf.mxu0
    %707 = vdwg.mxu0
    %vm708 = vcmp.gt.f32.partialorder %v661, 0.0
    %vm709 = vcmp.gt.f32.partialorder %v663, 0.0
    %v710 = vmul.f32 %v661, 0.01
    %v711 = vmul.f32 %v663, 0.01
    %v712 = vsel %vm708, %v661, %v710
    %v713 = vsel %vm709, %v663, %v711
    %v714 = vadd.f32 %v702, %v712
    %v715 = vadd.f32 %v704, %v713
    %vm716 = vcmp.gt.f32.partialorder %v714, 0.0
    %vm717 = vcmp.gt.f32.partialorder %v715, 0.0
    %v718 = vmul.f32 %v714, 0.01
    %v719 = vmul.f32 %v715, 0.01
    %v720 = vsel %vm716, %v714, %v718
    %v721 = vsel %vm717, %v715, %v719
    %v722 = vld [vmem:[%s9] sm:$0x3]
    %v724 = vlaneseq
    %v725 = vshrl.u32 %v724, 7
    %v726 = vsub.s32 0, %v725
    %v727 = vrot.slane %v722, %v726
    %v728 = vlaneseq
    %v729 = vshrl.u32 %v728, 7
    %v730 = vsub.s32 1, %v729
    %v731 = vrot.slane %v722, %v730
    %v734 = vmul.f32 %v720, %v727
    %v735 = vmul.f32 %v721, %v731
    %v736 = vadd.f32 %v734, %v735
    %737 = vadd.xlane.f32.xlu0 %v736
    %v738 = vpop.xlane.xlu0 %737
    %v739 = vld [vmem:[#allocation2] sm:$0x1]
    %v741 = vlaneseq
    %v742 = vshrl.u32 %v741, 7
    %v743 = vsub.s32 0, %v742
    %v744 = vrot.slane %v739, %v743
    %v746 = vadd.f32 %v738, %v744
    %v747 = vsub.f32 0.0, %v746
    %v748 = vmul.f32 %v747, 1.442695
    %v749 = vpow.pop %v748
    %v750 = vadd.f32 %v749, 1.0
    %v751 = vrcp.pop %v750
    %vm752 = vcmask 7168
    %753 = vst.msk [vmem:[%s11] sm:$0xff] %vm752, %v751
    // Predicated region
    $region70: #{tpu_custom_call.1} parent=1 // pred_check
      _
    $region71: #{tpu_custom_call.1} parent=1 // pred_check_branch
      %755 = sbr.rel (0) target = $region73
    $region72: #{tpu_custom_call.1} parent=1 // pred_region
      _
    $region73: #{tpu_custom_call.1} parent=1 // pred_fallthru
      _
    // Predicated region
    $region74: #{tpu_custom_call.1} parent=1 // pred_check
      _
    $region75: #{tpu_custom_call.1} parent=1 // pred_check_branch
      %757 = sbr.rel (0) target = $region77
    $region76: #{tpu_custom_call.1} parent=1 // pred_region
      _
    $region77: #{tpu_custom_call.1} parent=1 // pred_fallthru
      _
    %758 = vsyncpa [#allocation4], 1
    %759 = vsyncpa [#allocation6], 1
    %760 = vsyncpa [#allocation9], 1
    %761 = vsyncpa [#allocation12], 1

</llo_original>
